<compile_context>
chip_gen: v6e
topology: v6e:2x2x1
jax: 0.10.0
libtpu: 0.0.40
codegen_flags: <defaults>
</compile_context>

<pallas_src>
import jax
import jax.numpy as jnp
from jax.experimental import pallas as pl
from jax.experimental.pallas import tpu as pltpu


# ----------------------------------------------------------------------------
# VMEM budgeting helpers.
# ----------------------------------------------------------------------------
def _ceil_to(x, m):
    return -(-x // m) * m


def _divisors_desc(n, cap=None):
    ds = [d for d in range(1, n + 1) if n % d == 0]
    if cap is not None:
        ds = [d for d in ds if d <= cap]
    return sorted(ds, reverse=True)


def _vmem_budget():
    """(per-step single-copy cap, explicit scoped-VMEM limit) in bytes."""
    try:
        vmem_total = int(pltpu.get_tpu_info().vmem_capacity_bytes)
    except Exception:
        vmem_total = 64 << 20          # conservative: v7x has 64 MiB per TensorCore
    step_cap = min(12 << 20, vmem_total // 5)
    vmem_limit = min(vmem_total // 2, 2 * step_cap + (4 << 20))
    return int(step_cap), int(vmem_limit)


# ----------------------------------------------------------------------------
# Layout A ("unfolded"): spatial extent hw on the lane axis, tiled by f_blk.
#   x  : (n_data, K, l_input, hw)    block (b_d, k_blk, l_input, f_blk)
#   d  : (n_data, l_data, hw)        block (b_d, l_data, f_blk)
#   out: (n_data, K, l_out, hw)      block (b_d, k_blk, l_out, f_blk)
# ----------------------------------------------------------------------------
def _plan_unfolded(n_data, K, l_input, l_data, l_out, hw, itemsize, step_cap):
    sub = max(8, 32 // itemsize)                    # sublane tile for this dtype
    li, ld, lo = (_ceil_to(l_input, sub), _ceil_to(l_data, sub), _ceil_to(l_out, sub))

    def step_bytes(b_d, k_blk, f_blk):              # one copy of all blocks, VMEM-padded
        return itemsize * b_d * _ceil_to(f_blk, 128) * (k_blk * li + ld + k_blk * lo)

    f_min = min(hw, 128)
    k_blk = None                                    # replica tile (unroll-capped at 8)
    for cand in _divisors_desc(K, cap=8):
        if step_bytes(1, cand, f_min) <= step_cap:
            k_blk = cand
            break
    if k_blk is None:
        return None

    if hw <= 128:
        f_blk = hw                                  # full-extent lane block (128-rule exempt)
    else:
        per_lane = itemsize * (k_blk * li + ld + k_blk * lo)
        max_lanes = step_cap // per_lane
        f_blk = min(_ceil_to(hw, 128), max(128, (max_lanes // 128) * 128))

    b_d = _divisors_desc(n_data, cap=max(1, step_cap // step_bytes(1, k_blk, f_blk)))[0]

    # Megacore: keep at least two grid steps along a parallel axis if possible.
    if (n_data // b_d) * (K // k_blk) * pl.cdiv(hw, f_blk) == 1:
        if hw > 128:
            f_blk = 128 * pl.cdiv(pl.cdiv(hw, 128), 2)
        elif n_data >= 2:
            b_d = _divisors_desc(n_data, cap=max(1, n_data // 2))[0]

    assert step_bytes(b_d, k_blk, f_blk) <= step_cap, "block exceeds VMEM budget"
    return b_d, k_blk, f_blk


def _unfolded_kernel(l_input, k_blk):
    def kernel(x_ref, d_ref, o_ref):
        # Input half: one big contiguous copy (pure vld/vst).
        o_ref[:, :, :l_input, :] = x_ref[...]
        # Data half: load once, replicate with k_blk plain slice stores.
        # TODO(synk): if l_input is not sublane-aligned, pre-rotating d once into
        # a scratch would remove the per-replica boundary fix-ups (minor win).
        d = d_ref[...]
        for k in range(k_blk):
            o_ref[:, k, l_input:, :] = d
    return kernel


# ----------------------------------------------------------------------------
# Layout B ("lane-folded", for hw < 128): each row's (l, *spatial) is flattened
# onto the lane axis so no zero padding is ever streamed through HBM.
#   x  : (n_data, K, 1, l_input*hw)  block (b_d, k_blk, 1, Lx)
#   d  : (n_data, 1, 1, l_data*hw)   block (b_d, 1, 1, Ld)
#   out: (n_data, K, 1, l_out*hw)    block (b_d, k_blk, 1, Lo)
# ----------------------------------------------------------------------------
def _plan_folded(n_data, K, Lx, Ld, Lo, itemsize, step_cap):
    sub = max(8, 32 // itemsize)
    lx, ld, lo = _ceil_to(Lx, 128), _ceil_to(Ld, 128), _ceil_to(Lo, 128)

    def step_bytes(b_d, k_blk):                     # includes the 1->sub sublane padding
        return itemsize * b_d * sub * (k_blk * lx + ld + k_blk * lo)

    k_blk = None
    for cand in _divisors_desc(K, cap=8):
        if step_bytes(1, cand) <= step_cap:
            k_blk = cand
            break
    if k_blk is None:
        return None
    b_d = _divisors_desc(n_data, cap=max(1, step_cap // step_bytes(1, k_blk)))[0]
    if (n_data // b_d) * (K // k_blk) == 1 and n_data >= 2:
        b_d = _divisors_desc(n_data, cap=max(1, n_data // 2))[0]
    assert step_bytes(b_d, k_blk) <= step_cap, "block exceeds VMEM budget"
    return b_d, k_blk


def _folded_kernel(Lx, k_blk):
    def kernel(x_ref, d_ref, o_ref):
        o_ref[:, :, :, :Lx] = x_ref[...]            # input half: lanes [0, Lx)
        d = d_ref[:, 0]                             # (b_d, 1, Ld)
        for k in range(k_blk):
            o_ref[:, k, :, Lx:] = d                 # data half: lanes [Lx, Lo)
    return kernel


# ----------------------------------------------------------------------------
# Wrapper.
# ----------------------------------------------------------------------------
def merge_skip_connection(x, data):
    """out[i, :l_input] = x[i] ; out[i, l_input:] = data[i // K]."""
    n_input, l_input = x.shape[0], x.shape[1]
    n_data, l_data = data.shape[0], data.shape[1]
    spatial = tuple(x.shape[2:])
    if tuple(data.shape[2:]) != spatial:
        raise ValueError("input and memory spatial shapes must match")
    if n_data <= 0 or n_input % n_data != 0:
        raise ValueError("n_input must be a positive multiple of n_data")
    K = n_input // n_data
    l_out = l_input + l_data

    # torch.cat-style dtype promotion (no silent downcast of the memory tensor).
    out_dtype = jnp.promote_types(x.dtype, data.dtype)
    x = x.astype(out_dtype)
    data = data.astype(out_dtype)
    itemsize = jnp.dtype(out_dtype).itemsize

    hw = 1
    for s in spatial:
        hw *= int(s)
    hw = max(hw, 1)

    step_cap, vmem_limit = _vmem_budget()
    # TODO(synk): the input half could bypass VMEM entirely via manual HBM->HBM
    # make_async_copy (memory_space=pl.ANY); kept on the simple BlockSpec path
    # since total HBM bytes moved are identical.

    if hw < 128:
        plan = _plan_folded(n_data, K, l_input * hw, l_data * hw, l_out * hw,
                            itemsize, step_cap)
        if plan is not None:
            b_d, k_blk = plan
            Lx, Ld, Lo = l_input * hw, l_data * hw, l_out * hw
            x_f = x.reshape(n_data, K, 1, Lx)
            d_f = data.reshape(n_data, 1, 1, Ld)
            grid = (n_data // b_d, K // k_blk)      # K axis last -> d block reused
            out_f = pl.pallas_call(
                _folded_kernel(Lx, k_blk),
                out_shape=jax.ShapeDtypeStruct((n_data, K, 1, Lo), out_dtype),
                grid_spec=pltpu.PrefetchScalarGridSpec(
                    num_scalar_prefetch=0,
                    grid=grid,
                    in_specs=[
                        pl.BlockSpec((b_d, k_blk, 1, Lx), lambda i, k: (i, k, 0, 0)),
                        pl.BlockSpec((b_d, 1, 1, Ld), lambda i, k: (i, 0, 0, 0)),
                    ],
                    out_specs=pl.BlockSpec((b_d, k_blk, 1, Lo),
                                           lambda i, k: (i, k, 0, 0)),
                ),
                compiler_params=pltpu.CompilerParams(
                    dimension_semantics=("parallel",) * len(grid),
                    vmem_limit_bytes=vmem_limit),
            )(x_f, d_f)
            return out_f.reshape(n_input, l_out, *spatial)

    plan = _plan_unfolded(n_data, K, l_input, l_data, l_out, hw, itemsize, step_cap)
    if plan is None:
        # TODO(synk): split the l (channel/sequence) axis across the grid for
        # extremely long rows; unreachable for realistic shapes.
        raise ValueError("MergeSkipConnection: a single row does not fit the "
                         "per-step VMEM budget")
    b_d, k_blk, f_blk = plan
    x_f = x.reshape(n_data, K, l_input, hw)
    d_f = data.reshape(n_data, l_data, hw)
    grid = (n_data // b_d, pl.cdiv(hw, f_blk), K // k_blk)   # K axis last (d reuse)
    out_f = pl.pallas_call(
        _unfolded_kernel(l_input, k_blk),
        out_shape=jax.ShapeDtypeStruct((n_data, K, l_out, hw), out_dtype),
        grid_spec=pltpu.PrefetchScalarGridSpec(
            num_scalar_prefetch=0,
            grid=grid,
            in_specs=[
                pl.BlockSpec((b_d, k_blk, l_input, f_blk),
                             lambda i, j, k: (i, k, 0, j)),
                pl.BlockSpec((b_d, l_data, f_blk),
                             lambda i, j, k: (i, 0, j)),
            ],
            out_specs=pl.BlockSpec((b_d, k_blk, l_out, f_blk),
                                   lambda i, j, k: (i, k, 0, j)),
        ),
        compiler_params=pltpu.CompilerParams(
            dimension_semantics=("parallel",) * len(grid),
            vmem_limit_bytes=vmem_limit),
    )(x_f, d_f)
    return out_f.reshape(n_input, l_out, *spatial)


class Memory:
    """Stand-in for the PyTorch `memory` object: holds a fixed tensor."""

    def __init__(self, data):
        self._data = data

    def get_memory(self):
        return self._data


class MergeSkipConnection:
    def __init__(self, memory):
        self.memory = memory

    def __call__(self, x):
        return merge_skip_connection(x, self.memory.get_memory())


if __name__ == "__main__":
    key = jax.random.PRNGKey(0)
    k1, k2, k3, k4 = jax.random.split(key, 4)

    # Case 1: n_data == n_input (K == 1) -> plain channel concat.  hw = 256.
    n, c_in, c_data, h, w = 2, 4, 4, 16, 16
    x1 = jax.random.normal(k1, (n, c_in, h, w), dtype=jnp.float32)
    d1 = jax.random.normal(k2, (n, c_data, h, w), dtype=jnp.float32)
    out1 = jax.block_until_ready(MergeSkipConnection(Memory(d1))(x1))
    ref1 = jnp.concatenate([x1, d1], axis=1)
    assert out1.shape == (n, c_in + c_data, h, w)
    assert bool(jnp.array_equal(out1, ref1))

    # Case 2: n_input = K * n_data (K == 2) -> memory rows tiled per entry.
    K2 = 2
    x2 = jax.random.normal(k3, (n * K2, c_in, h, w), dtype=jnp.float32)
    out2 = jax.block_until_ready(MergeSkipConnection(Memory(d1))(x2))
    ref2 = jnp.concatenate(
        [x2.reshape(n, K2, c_in, h, w),
         jnp.broadcast_to(d1[:, None], (n, K2, c_data, h, w))],
        axis=2).reshape(n * K2, c_in + c_data, h, w)
    assert bool(jnp.array_equal(out2, ref2))

    # Case 3: tiny spatial (hw = 25 < 128) with K = 3 -> lane-folded layout.
    x3 = jax.random.normal(k4, (6, 3, 5, 5), dtype=jnp.float32)
    d3 = jax.random.normal(k2, (2, 4, 5, 5), dtype=jnp.float32)
    out3 = jax.block_until_ready(MergeSkipConnection(Memory(d3))(x3))
    ref3 = jnp.concatenate(
        [x3.reshape(2, 3, 3, 5, 5),
         jnp.broadcast_to(d3[:, None], (2, 3, 4, 5, 5))],
        axis=2).reshape(6, 7, 5, 5)
    assert bool(jnp.array_equal(out3, ref3))

    # Case 4: hw = 160 (not a multiple of 128) -> ragged last lane block,
    # no HBM-side padding / un-padding passes.
    x4 = jax.random.normal(k1, (2, 4, 10, 16), dtype=jnp.float32)
    d4 = jax.random.normal(k2, (2, 4, 10, 16), dtype=jnp.float32)
    out4 = jax.block_until_ready(MergeSkipConnection(Memory(d4))(x4))
    ref4 = jnp.concatenate([x4, d4], axis=1)
    assert bool(jnp.array_equal(out4, ref4))

    print("KERNEL_OK")
</pallas_src>

<mosaic_0001>
module attributes {stable_mosaic.version = 11 : i64} {
  func.func @kernel(%arg0: i32, %arg1: i32, %arg2: i32, %arg3: memref<2x1x4x128xf32, #tpu.memory_space<vmem>>, %arg4: memref<2x4x128xf32, #tpu.memory_space<vmem>>, %arg5: memref<2x1x8x128xf32, #tpu.memory_space<vmem>>) attributes {dimension_semantics = [#tpu.dimension_semantics<parallel>, #tpu.dimension_semantics<parallel>, #tpu.dimension_semantics<parallel>], iteration_bounds = array<i64: 1, 2, 1>, scalar_prefetch = 0 : i64, scratch_operands = 0 : i64, tpu.core_type = #tpu.core_type<tc>, window_params = [{transform_indices = @transform_0, window_bounds = array<i64: 2, 1, 4, 128>}, {transform_indices = @transform_1, window_bounds = array<i64: 2, 4, 128>}, {transform_indices = @transform_2, window_bounds = array<i64: 2, 1, 8, 128>}]} {
    %c0 = arith.constant 0 : index
    %c0_0 = arith.constant 0 : index
    %c0_1 = arith.constant 0 : index
    %c0_2 = arith.constant 0 : index
    %0 = vector.load %arg3[%c0, %c0_0, %c0_1, %c0_2] : memref<2x1x4x128xf32, #tpu.memory_space<vmem>>, vector<2x1x4x128xf32>
    %c0_3 = arith.constant 0 : index
    %c0_4 = arith.constant 0 : index
    %c0_5 = arith.constant 0 : index
    %c0_6 = arith.constant 0 : index
    %1 = vector.load %arg5[%c0_3, %c0_4, %c0_5, %c0_6] : memref<2x1x8x128xf32, #tpu.memory_space<vmem>>, vector<2x1x4x128xf32>
    tpu.vector_store %arg5[%c0_3, %c0_4, %c0_5, %c0_6], %0 {strides = array<i32>} : memref<2x1x8x128xf32, #tpu.memory_space<vmem>>, vector<2x1x4x128xf32>,
    %c0_7 = arith.constant 0 : index
    %c0_8 = arith.constant 0 : index
    %c0_9 = arith.constant 0 : index
    %2 = vector.load %arg4[%c0_7, %c0_8, %c0_9] : memref<2x4x128xf32, #tpu.memory_space<vmem>>, vector<2x4x128xf32>
    %c0_10 = arith.constant 0 : index
    %c0_11 = arith.constant 0 : index
    %c4 = arith.constant 4 : index
    %c0_12 = arith.constant 0 : index
    %3 = vector.load %arg5[%c0_10, %c0_11, %c4, %c0_12] : memref<2x1x8x128xf32, #tpu.memory_space<vmem>>, vector<2x1x4x128xf32>
    %4 = vector.shape_cast %3 : vector<2x1x4x128xf32> to vector<2x4x128xf32>
    %5 = vector.shape_cast %2 : vector<2x4x128xf32> to vector<2x1x4x128xf32>
    tpu.vector_store %arg5[%c0_10, %c0_11, %c4, %c0_12], %5 {strides = array<i32>} : memref<2x1x8x128xf32, #tpu.memory_space<vmem>>, vector<2x1x4x128xf32>,
    return
  }
  func.func @transform_0(%arg0: i32, %arg1: i32, %arg2: i32) -> (i32, i32, i32, i32) {
    %c0_i32 = arith.constant 0 : i32
    %c0_i32_0 = arith.constant 0 : i32
    return %arg0, %arg2, %c0_i32, %arg1 : i32, i32, i32, i32
  }
  func.func @transform_1(%arg0: i32, %arg1: i32, %arg2: i32) -> (i32, i32, i32) {
    %c0_i32 = arith.constant 0 : i32
    %c0_i32_0 = arith.constant 0 : i32
    return %arg0, %c0_i32, %arg1 : i32, i32, i32
  }
  func.func @transform_2(%arg0: i32, %arg1: i32, %arg2: i32) -> (i32, i32, i32, i32) {
    %c0_i32 = arith.constant 0 : i32
    %c0_i32_0 = arith.constant 0 : i32
    return %arg0, %arg2, %c0_i32, %arg1 : i32, i32, i32, i32
  }
}

</mosaic_0001>

<llo_original>
// kernel: tpu_custom_call.1
$region0: #{tpu_custom_call.1}
  #allocation0 [shape = 'u32[]', space=smem, size = 0x4, offset = 0x4, fixed_abs, tag = 'smem constant byte address 0x4 - core index']
  #allocation1 [shape = 'u32[144,128]{1,0:T(1,128)}', space=vmem, size = 0x12000, scoped, tag = 'internal scratch']
  %s0 = inlined_call_operand.hbm [shape: f32[2,1,4,256], index: 0, kind: input, shape index: {}]
  %s1 = inlined_call_operand.hbm [shape: f32[2,4,256], index: 1, kind: input, shape index: {}]
  %s2 = inlined_call_operand.hbm [shape: f32[2,1,8,256], index: 2, kind: output, shape index: {}]
  %s3 = sld [smem:[#allocation0]]
  $region49: #{tpu_custom_call.1} parent=0
    _
  %s5 = ssub.s32 1, %s3
  %s6 = scalar_select 0, %s5, %s3
  $region1: #{tpu_custom_call.1} parent=0
    #allocation2 [shape = 'u8[8192]{0}', space=vmem, size = 0x2000, scoped, tag = 'input window, operand 0']
    #allocation3 [shape = 's32[2]{0}', space=sflag, size = 0x8, scoped, tag = 'scoped memory for tpu_custom_call.1']
    #allocation4 [shape = 's32[2]{0}', space=sflag, size = 0x8, scoped, tag = 'scoped memory for tpu_custom_call.1']
    #allocation5 [shape = 'u8[8192]{0}', space=vmem, size = 0x2000, scoped, tag = 'input window, operand 1']
    #allocation6 [shape = 's32[2]{0}', space=sflag, size = 0x8, scoped, tag = 'scoped memory for tpu_custom_call.1']
    #allocation7 [shape = 'u8[16384]{0}', space=vmem, size = 0x4000, scoped, tag = 'output window, operand 0']
    %7 = vsyncpa [#allocation3], 0
    %s8 = scalar_lea.sflag [#allocation3], 1
    %9 = vsyncpa %s8, 0
    %10 = vsyncpa [#allocation6], 0
    %s11 = scalar_lea.sflag [#allocation6], 1
    %12 = vsyncpa %s11, 0
    %13 = vsyncpa [#allocation4], 0
    %s14 = scalar_lea.sflag [#allocation4], 1
    %15 = vsyncpa %s14, 0
    loop: start=0, step=1, limit=4
    $region2: #{tpu_custom_call.1} parent=1 // loop_pre_header
      _
    $region3: #{tpu_custom_call.1} parent=1 // loop_header
      %s17 = sphi 0, %s21
      %p18 = scmp.ge.s32.totalorder %s17, 4
      %s24 = sphi 0, %s43
      %s25 = sphi 0, %s39
      %s26 = sphi 0, %s35
      %s27 = sphi 0, %s24
      %s28 = sphi 0, %s25
      %s29 = sphi 0, %s26
      %s30 = sphi 0, %s27
      %s31 = sphi 0, %s28
      %s32 = sphi 0, %s29
      %s50 = sphi 0, %s52
      %s53 = sphi 0, %s50
      %s54 = sphi 0, %s53
      %s70 = sphi 0, %s54
      %s78 = sphi 0, %s80
      %s81 = sphi 0, %s78
      %s82 = sphi 0, %s81
      %s98 = sphi 0, %s82
      %s108 = sphi 0, %s110
      %s111 = sphi 0, %s108
      %s112 = sphi 0, %s111
      %s128 = sphi 0, %s112
    $region4: #{tpu_custom_call.1} parent=1 // loop_header_branch
      %20 = sbr.rel (%p18) target = $region8
    $region5: #{tpu_custom_call.1} parent=1 // loop_body
      %s22 = ssub.s32 %s17, 1
      %s23 = ssub.s32 %s17, 2
      %s33 = sadd.s32 1, %s26
      %p34 = scmp.ge.s32.totalorder %s33, 1
      %s35 = scalar_select %p34, 0, %s33
      %s36 = sadd.s32 1, %s25
      %s37 = scalar_select %p34, %s36, %s25
      %p38 = scmp.ge.s32.totalorder %s37, 2
      %s39 = scalar_select %p38, 0, %s37
      %s40 = sadd.s32 1, %s24
      %s41 = scalar_select %p38, %s40, %s24
      %p42 = scmp.ge.s32.totalorder %s41, 1
      %s43 = scalar_select %p42, 0, %s41
      %s44 = ssub.s32 %s24, %s43
      %s45 = ssub.s32 %s26, %s35
      %s46 = sor.u32 %s44, %s45
      %s47 = ssub.s32 %s25, %s39
      %s48 = sor.u32 %s46, %s47
      %p49 = scmp.eq.s32.totalorder %s48, 0
      %s51 = sadd.s32 %s50, 1
      %s52 = scalar_select %p49, %s50, %s51
      %p55 = pneg %p49
      %p56 = scmp.eq.s32.totalorder %s17, 1
      %p57 = por %p55, %p56
      %p58 = scmp.ne.s32.totalorder %s50, %s53
      %p59 = scmp.eq.s32.totalorder %s17, 0
      %p60 = por %p58, %p59
      %p61 = scmp.ne.s32.totalorder %s50, %s53
      %p62 = scmp.eq.s32.totalorder %s22, 1
      %p63 = por %p61, %p62
      %p64 = scmp.ne.s32.totalorder %s53, %s54
      %p65 = scmp.eq.s32.totalorder %s22, 0
      %p66 = por %p64, %p65
      %p67 = scmp.ne.s32.totalorder %s53, %s54
      %p68 = scmp.eq.s32.totalorder %s23, 1
      %p69 = por %p67, %p68
      %p71 = scmp.ne.s32.totalorder %s54, %s70
      %p72 = scmp.eq.s32.totalorder %s23, 0
      %p73 = por %p71, %p72
      %s74 = ssub.s32 %s24, %s43
      %s75 = ssub.s32 %s25, %s39
      %s76 = sor.u32 %s74, %s75
      %p77 = scmp.eq.s32.totalorder %s76, 0
      %s79 = sadd.s32 %s78, 1
      %s80 = scalar_select %p77, %s78, %s79
      %p83 = pneg %p77
      %p84 = scmp.eq.s32.totalorder %s17, 1
      %p85 = por %p83, %p84
      %p86 = scmp.ne.s32.totalorder %s78, %s81
      %p87 = scmp.eq.s32.totalorder %s17, 0
      %p88 = por %p86, %p87
      %p89 = scmp.ne.s32.totalorder %s78, %s81
      %p90 = scmp.eq.s32.totalorder %s22, 1
      %p91 = por %p89, %p90
      %p92 = scmp.ne.s32.totalorder %s81, %s82
      %p93 = scmp.eq.s32.totalorder %s22, 0
      %p94 = por %p92, %p93
      %p95 = scmp.ne.s32.totalorder %s81, %s82
      %p96 = scmp.eq.s32.totalorder %s23, 1
      %p97 = por %p95, %p96
      %p99 = scmp.ne.s32.totalorder %s82, %s98
      %p100 = scmp.eq.s32.totalorder %s23, 0
      %p101 = por %p99, %p100
      %s102 = ssub.s32 %s24, %s43
      %s103 = ssub.s32 %s26, %s35
      %s104 = sor.u32 %s102, %s103
      %s105 = ssub.s32 %s25, %s39
      %s106 = sor.u32 %s104, %s105
      %p107 = scmp.eq.s32.totalorder %s106, 0
      %s109 = sadd.s32 %s108, 1
      %s110 = scalar_select %p107, %s108, %s109
      %p113 = pneg %p107
      %p114 = scmp.eq.s32.totalorder %s17, 1
      %p115 = por %p113, %p114
      %p116 = scmp.ne.s32.totalorder %s108, %s111
      %p117 = scmp.eq.s32.totalorder %s17, 0
      %p118 = por %p116, %p117
      %p119 = scmp.ne.s32.totalorder %s108, %s111
      %p120 = scmp.eq.s32.totalorder %s22, 1
      %p121 = por %p119, %p120
      %p122 = scmp.ne.s32.totalorder %s111, %s112
      %p123 = scmp.eq.s32.totalorder %s22, 0
      %p124 = por %p122, %p123
      %p125 = scmp.ne.s32.totalorder %s111, %s112
      %p126 = scmp.eq.s32.totalorder %s23, 1
      %p127 = por %p125, %p126
      %p129 = scmp.ne.s32.totalorder %s112, %s128
      %p130 = scmp.eq.s32.totalorder %s23, 0
      %p131 = por %p129, %p130
      %p132 = scmp.le.s32.totalorder 1, %s17
      %p133 = scmp.lt.s32.totalorder %s17, 3
      %p134 = pnand %p132, %p133
      %p135 = pneg %p134
      // Predicated region
      $region9: #{tpu_custom_call.1} parent=5 // pred_check
        _
      $region10: #{tpu_custom_call.1} parent=5 // pred_check_branch
        %137 = sbr.rel (%p134) target = $region12
      $region11: #{tpu_custom_call.1} parent=5 // pred_region
        %s138 = ssub.s32 %s17, 1
      $region12: #{tpu_custom_call.1} parent=5 // pred_fallthru
        _
      %p139 = scmp.lt.s32.totalorder %s17, 2
      // Predicated region
      $region13: #{tpu_custom_call.1} parent=5 // pred_check
        %p140 = pneg %p139
      $region14: #{tpu_custom_call.1} parent=5 // pred_check_branch
        %142 = sbr.rel (%p140) target = $region16
      $region15: #{tpu_custom_call.1} parent=5 // pred_region
        // Predicated region
        $region17: #{tpu_custom_call.1} parent=15 // pred_check
          %p143 = pneg %p60
        $region18: #{tpu_custom_call.1} parent=15 // pred_check_branch
          %145 = sbr.rel (%p143) target = $region20
        $region19: #{tpu_custom_call.1} parent=15 // pred_region
          %s146 = sand.u32 %s50, 1
          %s147 = scalar_lea.sflag [#allocation3], %s146
          %s148 = sand.u32 %s50, 1
          %s149 = smul.addr %s148, 8
          %s150 = scalar_lea.vmem [#allocation2], %s149
          %s151 = smul.u32 2, %s24
          %s153 = ssub.s32 128, 128
          %154 = vsyncadd %s147, %s153
          %s155 = smul.addr %s26, 2
          %s156 = sadd.s32 %s25, %s155
          %s157 = smul.addr %s151, 2
          %s158 = sadd.s32 %s156, %s157
          %s159 = smul.addr %s158, 64
          %s160 = scalar_lea.hbm %s0, %s159
          %s161 = sshll.u32 %s150, 4
          %s162 = int_to_ptr.vmem [resolvable:$true] %s161
          %167 = dma.hbm_to_vmem [thread:$0]  %s160, 128, %s162, %s147, 128, 64, 4
        $region20: #{tpu_custom_call.1} parent=15 // pred_fallthru
          _
        // Predicated region
        $region21: #{tpu_custom_call.1} parent=15 // pred_check
          %p168 = pneg %p88
        $region22: #{tpu_custom_call.1} parent=15 // pred_check_branch
          %170 = sbr.rel (%p168) target = $region24
        $region23: #{tpu_custom_call.1} parent=15 // pred_region
          %s171 = sand.u32 %s78, 1
          %s172 = scalar_lea.sflag [#allocation6], %s171
          %s173 = sand.u32 %s78, 1
          %s174 = smul.addr %s173, 8
          %s175 = scalar_lea.vmem [#allocation5], %s174
          %s176 = smul.u32 2, %s24
          %s178 = ssub.s32 128, 128
          %179 = vsyncadd %s172, %s178
          %s180 = smul.addr %s176, 2
          %s181 = sadd.s32 %s25, %s180
          %s182 = smul.addr %s181, 64
          %s183 = scalar_lea.hbm %s1, %s182
          %s184 = sshll.u32 %s175, 4
          %s185 = int_to_ptr.vmem [resolvable:$true] %s184
          %190 = dma.hbm_to_vmem [thread:$0]  %s183, 128, %s185, %s172, 128, 64, 4
        $region24: #{tpu_custom_call.1} parent=15 // pred_fallthru
          _
      $region16: #{tpu_custom_call.1} parent=5 // pred_fallthru
        _
      %p191 = scmp.le.s32.totalorder 1, %s17
      %p192 = scmp.lt.s32.totalorder %s17, 3
      %p193 = pnand %p191, %p192
      %p194 = pneg %p193
      // Predicated region
      $region25: #{tpu_custom_call.1} parent=5 // pred_check
        _
      $region26: #{tpu_custom_call.1} parent=5 // pred_check_branch
        %196 = sbr.rel (%p193) target = $region28
      $region27: #{tpu_custom_call.1} parent=5 // pred_region
        %s197 = ssub.s32 %s17, 1
        %s198 = sand.u32 %s53, 1
        %s199 = scalar_lea.sflag [#allocation3], %s198
        %s200 = sand.u32 %s53, 1
        %s201 = smul.addr %s200, 8
        %s202 = scalar_lea.vmem [#allocation2], %s201
        // Predicated region
        $region29: #{tpu_custom_call.1} parent=27 // pred_check
          %p203 = pneg %p66
        $region30: #{tpu_custom_call.1} parent=27 // pred_check_branch
          %205 = sbr.rel (%p203) target = $region32
        $region31: #{tpu_custom_call.1} parent=27 // pred_region
          %206 = dma.done %s199, 128
        $region32: #{tpu_custom_call.1} parent=27 // pred_fallthru
          _
        %s207 = sand.u32 %s81, 1
        %s208 = scalar_lea.sflag [#allocation6], %s207
        %s209 = sand.u32 %s81, 1
        %s210 = smul.addr %s209, 8
        %s211 = scalar_lea.vmem [#allocation5], %s210
        // Predicated region
        $region33: #{tpu_custom_call.1} parent=27 // pred_check
          %p212 = pneg %p94
        $region34: #{tpu_custom_call.1} parent=27 // pred_check_branch
          %214 = sbr.rel (%p212) target = $region36
        $region35: #{tpu_custom_call.1} parent=27 // pred_region
          %215 = dma.done %s208, 128
        $region36: #{tpu_custom_call.1} parent=27 // pred_fallthru
          _
        %s216 = sand.u32 %s53, 1
        %s217 = scalar_lea.sflag [#allocation3], %s216
        %s218 = sand.u32 %s53, 1
        %s219 = smul.addr %s218, 8
        %s220 = scalar_lea.vmem [#allocation2], %s219
        %p221 = pneg %p66
        %p222 = pneg %p63
        %s223 = sand.u32 %s81, 1
        %s224 = scalar_lea.sflag [#allocation6], %s223
        %s225 = sand.u32 %s81, 1
        %s226 = smul.addr %s225, 8
        %s227 = scalar_lea.vmem [#allocation5], %s226
        %p228 = pneg %p94
        %p229 = pneg %p91
        %p230 = pneg %p124
        %p231 = pneg %p121
        %s232 = sand.u32 %s111, 1
        %s233 = scalar_lea.sflag [#allocation4], %s232
        %s234 = sand.u32 %s111, 1
        %s235 = smul.addr %s234, 16
        %s236 = scalar_lea.vmem [#allocation7], %s235
        %s237 = smul.u32 2, %s27
        %s238 = smul.u32 2, %s27
        %s239 = smul.u32 2, %s27
        %v240 = vld [vmem:[%s202] sm:$0xf]
        %v241 = vld [vmem:[%s202 + $0x4] sm:$0xf]
        %242 = vst [vmem:[%s236] sm:$0xf] %v240
        %243 = vst [vmem:[%s236 + $0x8] sm:$0xf] %v241
        %v244 = vld [vmem:[%s211] sm:$0xf]
        %v245 = vld [vmem:[%s211 + $0x4] sm:$0xf]
        %246 = vst [vmem:[%s236 + $0x4] sm:$0xf] %v244
        %247 = vst [vmem:[%s236 + $0xc] sm:$0xf] %v245
        %s248 = sand.u32 %s111, 1
        %s249 = scalar_lea.sflag [#allocation4], %s248
        %s250 = sand.u32 %s111, 1
        %s251 = smul.addr %s250, 16
        %s252 = scalar_lea.vmem [#allocation7], %s251
        // Predicated region
        $region37: #{tpu_custom_call.1} parent=27 // pred_check
          %p253 = pneg %p121
        $region38: #{tpu_custom_call.1} parent=27 // pred_check_branch
          %255 = sbr.rel (%p253) target = $region40
        $region39: #{tpu_custom_call.1} parent=27 // pred_region
          %s256 = smul.u32 2, %s27
          %s258 = ssub.s32 256, 256
          %259 = vsyncadd %s249, %s258
          %s260 = smul.addr %s29, 2
          %s261 = sadd.s32 %s28, %s260
          %s262 = smul.addr %s256, 2
          %s263 = sadd.s32 %s261, %s262
          %s264 = smul.addr %s263, 128
          %s265 = scalar_lea.hbm %s2, %s264
          %s266 = sshll.u32 %s252, 4
          %s267 = int_to_ptr.vmem [resolvable:$true] %s266
          %272 = dma.vmem_to_hbm [thread:$0]  %s267, 256, %s265, %s249, 128, 256, 8
        $region40: #{tpu_custom_call.1} parent=27 // pred_fallthru
          _
      $region28: #{tpu_custom_call.1} parent=5 // pred_fallthru
        _
      %p273 = scmp.le.s32.totalorder 2, %s17
      // Predicated region
      $region41: #{tpu_custom_call.1} parent=5 // pred_check
        %p274 = pneg %p273
      $region42: #{tpu_custom_call.1} parent=5 // pred_check_branch
        %276 = sbr.rel (%p274) target = $region44
      $region43: #{tpu_custom_call.1} parent=5 // pred_region
        %s277 = ssub.s32 %s17, 2
        // Predicated region
        $region45: #{tpu_custom_call.1} parent=43 // pred_check
          %p278 = pneg %p127
        $region46: #{tpu_custom_call.1} parent=43 // pred_check_branch
          %280 = sbr.rel (%p278) target = $region48
        $region47: #{tpu_custom_call.1} parent=43 // pred_region
          %s281 = sand.u32 %s112, 1
          %s282 = scalar_lea.sflag [#allocation4], %s281
          %s283 = sand.u32 %s112, 1
          %s284 = smul.addr %s283, 16
          %s285 = scalar_lea.vmem [#allocation7], %s284
          %286 = dma.done %s282, 256
        $region48: #{tpu_custom_call.1} parent=43 // pred_fallthru
          _
      $region44: #{tpu_custom_call.1} parent=5 // pred_fallthru
        _
    $region6: #{tpu_custom_call.1} parent=1 // loop_footer
      %s21 = sadd.s32 1, %s17
    $region7: #{tpu_custom_call.1} parent=1 // loop_footer_branch
      %16 = sbr.rel target = $region3
    $region8: #{tpu_custom_call.1} parent=1 // loop_exit
      _
    %287 = vsyncpa [#allocation3], 1
    %s288 = scalar_lea.sflag [#allocation3], 1
    %289 = vsyncpa %s288, 1
    %290 = vsyncpa [#allocation6], 1
    %s291 = scalar_lea.sflag [#allocation6], 1
    %292 = vsyncpa %s291, 1
    %293 = vsyncpa [#allocation4], 1
    %s294 = scalar_lea.sflag [#allocation4], 1
    %295 = vsyncpa %s294, 1

</llo_original>
